<compile_context>
chip_gen: v5e
topology: v5e:2x2
jax: 0.10.0
libtpu: 0.0.40
codegen_flags: <defaults>
</compile_context>

<pallas_src>
import functools

import jax
import jax.numpy as jnp
from jax.experimental import pallas as pl
from jax.experimental.pallas import tpu as pltpu


# ----------------------------------------------------------------------------
# Kernels
# ----------------------------------------------------------------------------

def _layernorm_kernel(x_ref, a_ref, b_ref, o_ref, *, eps, epilogue_dtype):
    """One (row_tile, H) block, H >= lane width (or unfoldable).

    Matches the torch module exactly: mean over last dim, unbiased std
    (ddof=1), eps added to the std."""
    x = x_ref[...].astype(jnp.float32)               # (tm, H); accumulate in f32
    h = x.shape[-1]

    mean = jnp.mean(x, axis=-1, keepdims=True)       # (tm, 1)
    xc = x - mean                                    # reused for var AND output
    denom = max(h - 1, 1)                            # guard features == 1
    var = jnp.sum(xc * xc, axis=-1, keepdims=True) * (1.0 / denom)
    std = jnp.sqrt(var)

    # Exact reciprocal on the (tm, 1) std column (the approx EUP reciprocal is
    # not worth its ~2^-12 error here -- the kernel is HBM-bound anyway).
    inv = 1.0 / (std + eps)                          # (tm, 1)

    # Epilogue in `epilogue_dtype` (f32, or bf16 on chips with bf16 VALUs).
    xc_e = xc.astype(epilogue_dtype)
    inv_e = inv.astype(epilogue_dtype)
    a_e = a_ref[...].astype(epilogue_dtype)          # (1, H)
    b_e = b_ref[...].astype(epilogue_dtype)          # (1, H)
    o_ref[...] = ((xc_e * inv_e) * a_e + b_e).astype(o_ref.dtype)


def _layernorm_grouped_kernel(x_ref, a_ref, b_ref, o_ref, *, eps, group,
                              epilogue_dtype):
    """Lane-folded variant for H < 128 (width = k * H == 128).

    Each 128-lane row of the block holds k independent feature rows of length
    `group`. Per-group mean / sum-of-squares are computed with a matmul
    against a block-diagonal group-membership matrix (MXU is idle here), which
    also broadcasts the reduction back across the group's lanes -- everything
    stays 2-D and stores stay unmasked/lane-dense."""
    x = x_ref[...].astype(jnp.float32)               # (tm, W), W = k * group
    w = x.shape[-1]

    row_g = jax.lax.broadcasted_iota(jnp.int32, (w, w), 0) // group
    col_g = jax.lax.broadcasted_iota(jnp.int32, (w, w), 1) // group
    gmat = (row_g == col_g).astype(jnp.float32)      # (W, W) block-diagonal

    # Per-group sums, already broadcast across each group's lanes.
    sums = jnp.dot(x, gmat, preferred_element_type=jnp.float32)      # (tm, W)
    mean = sums * (1.0 / group)
    xc = x - mean
    ssq = jnp.dot(xc * xc, gmat, preferred_element_type=jnp.float32)  # (tm, W)
    denom = max(group - 1, 1)                        # guard features == 1
    std = jnp.sqrt(ssq * (1.0 / denom))
    inv = 1.0 / (std + eps)                          # exact

    xc_e = xc.astype(epilogue_dtype)
    inv_e = inv.astype(epilogue_dtype)
    a_e = a_ref[...].astype(epilogue_dtype)          # (1, W) = a tiled k times
    b_e = b_ref[...].astype(epilogue_dtype)
    o_ref[...] = ((xc_e * inv_e) * a_e + b_e).astype(o_ref.dtype)


# ----------------------------------------------------------------------------
# Sizing / device helpers
# ----------------------------------------------------------------------------

def _device_kind():
    try:
        return jax.devices()[0].device_kind.lower()
    except Exception:
        return ""


def _is_two_tc_chip():
    return "v7" in _device_kind()


def _vmem_capacity_bytes():
    """Per-TensorCore VMEM capacity; generation-aware fallback."""
    try:
        return int(pltpu.get_tpu_info().vmem_capacity_bytes)
    except Exception:
        pass
    # v7x has 64 MiB per TC; v5e/v6e have 128 MiB.
    return (64 << 20) if _is_two_tc_chip() else (128 << 20)


def _default_epilogue_dtype(x_dtype):
    """bf16 epilogue only for bf16 inputs on chips with bf16 VALUs (v6e/v7x)."""
    if jnp.dtype(x_dtype) != jnp.dtype(jnp.bfloat16):
        return jnp.float32
    if "v5" in _device_kind():                       # v5e/v5p: no bf16 VALU
        return jnp.float32
    return jnp.bfloat16


def _choose_row_tile(rows, width, in_itemsize, out_itemsize, vmem_limit_bytes,
                     two_tc):
    """Largest sublane-friendly row tile that fits the VMEM budget.

    Single-TC chips (v5e/v6e): the VMEM-derived tile wins; only keep >= 2
    grid steps for DMA-in / compute / DMA-out overlap.
    v7x (2 TCs): keep >= 4 steps so each TC has blocks to pipeline, and
    prefer an even step count so neither TC idles on the last block."""
    # Double-buffered in/out blocks + ~3 f32-wide temporaries inside the kernel.
    per_row = 2 * width * (in_itemsize + out_itemsize) + 3 * width * 4
    budget = int(vmem_limit_bytes * 0.75)            # headroom for spills only
    tile = budget // max(per_row, 1)

    min_steps = 4 if two_tc else 2
    tile = min(tile, max(8, pl.cdiv(rows, min_steps)))
    tile = min(tile, rows)

    # Sublane-friendly rounding (multiple of 16 also covers bf16 row packing).
    if tile >= 16:
        tile = (tile // 16) * 16
    elif rows >= 8:
        tile = 8
    else:
        tile = rows                                   # tiny input: one full block
    tile = max(tile, 1)

    # v7x: best-effort nudge toward an even grid length for the two TCs.
    if two_tc and tile >= 8:
        steps = pl.cdiv(rows, tile)
        if steps > 1 and steps % 2 == 1:
            cand = pl.cdiv(rows, steps + 1)
            cand = max(8, ((cand + 7) // 8) * 8)      # keep sublane alignment
            if cand <= tile and pl.cdiv(rows, cand) % 2 == 0:
                tile = cand
    return tile


# ----------------------------------------------------------------------------
# Wrapper
# ----------------------------------------------------------------------------

def layer_norm(x, a2, b2, eps=1e-6, row_tile=None):
    """x: (..., features); a2, b2: (features,). Returns same shape/dtype as x."""
    orig_shape = x.shape
    h = orig_shape[-1]
    rows = 1
    for d in orig_shape[:-1]:
        rows *= d

    x2 = x.reshape(rows, h)

    # Lane folding for narrow feature dims: fold k = 128 // H independent rows
    # into the 128-lane axis so loads/stores stay lane-dense (unmasked vst).
    fold = 1
    if h < 128 and (128 % h == 0) and h > 1:
        k = 128 // h
        if rows % k == 0:
            fold = k
    # TODO(synk): pad the row count when rows % (128 // H) != 0 so narrow-H
    # inputs always take the lane-dense folded path.

    rows_f = rows // fold
    width = h * fold
    x2f = x2.reshape(rows_f, width)
    a2r = jnp.tile(a2.reshape(1, h), (1, fold))       # (1, width)
    b2r = jnp.tile(b2.reshape(1, h), (1, fold))       # (1, width)

    two_tc = _is_two_tc_chip()
    vmem_cap = _vmem_capacity_bytes()
    vmem_limit = int(vmem_cap * 0.85)                 # above the scoped defaults

    if row_tile is None:
        row_tile = _choose_row_tile(
            rows_f, width, x2f.dtype.itemsize, x2f.dtype.itemsize,
            vmem_limit, two_tc,
        )

    epilogue_dtype = _default_epilogue_dtype(x.dtype)

    if fold == 1:
        kernel = functools.partial(
            _layernorm_kernel, eps=eps, epilogue_dtype=epilogue_dtype)
    else:
        kernel = functools.partial(
            _layernorm_grouped_kernel, eps=eps, group=h,
            epilogue_dtype=epilogue_dtype)

    grid = (pl.cdiv(rows_f, row_tile),)   # ragged last block masked by Pallas

    out2 = pl.pallas_call(
        kernel,
        out_shape=jax.ShapeDtypeStruct((rows_f, width), x.dtype),
        grid_spec=pltpu.PrefetchScalarGridSpec(
            num_scalar_prefetch=0,
            grid=grid,
            in_specs=[
                pl.BlockSpec((row_tile, width), lambda i: (i, 0)),
                pl.BlockSpec((1, width), lambda i: (0, 0)),
                pl.BlockSpec((1, width), lambda i: (0, 0)),
            ],
            out_specs=pl.BlockSpec((row_tile, width), lambda i: (i, 0)),
        ),
        compiler_params=pltpu.CompilerParams(
            dimension_semantics=("parallel",),
            vmem_limit_bytes=vmem_limit,
        ),
    )(x2f, a2r, b2r)

    return out2.reshape(orig_shape)


# ----------------------------------------------------------------------------
# Demo / self-check
# ----------------------------------------------------------------------------

def _reference(x, a2, b2, eps):
    """Pure-JAX reference (torch semantics: unbiased std, eps added to std)."""
    h = x.shape[-1]
    mean = jnp.mean(x, axis=-1, keepdims=True)
    std = jnp.sqrt(jnp.sum((x - mean) ** 2, axis=-1, keepdims=True) / (h - 1))
    return a2 * (x - mean) / (std + eps) + b2


if __name__ == "__main__":
    key = jax.random.PRNGKey(0)
    eps = 1e-6

    # Case 1: hidden multiple of 128 -> lane-dense direct path.
    batch, seq, hidden = 2, 8, 128
    k1, k2 = jax.random.split(key)
    x = jax.random.normal(k1, (batch, seq, hidden), dtype=jnp.float32)
    a2 = jnp.ones((hidden,), dtype=jnp.float32)       # nn.Parameter(torch.ones)
    b2 = jnp.zeros((hidden,), dtype=jnp.float32)      # nn.Parameter(torch.zeros)

    out = jax.block_until_ready(layer_norm(x, a2, b2, eps=eps))
    ref = _reference(x, a2, b2, eps)
    assert out.shape == x.shape and out.dtype == x.dtype
    err = float(jnp.max(jnp.abs(out - ref)))
    assert err < 1e-4, f"max abs err (H=128) {err}"

    # Case 2: narrow hidden (H=32 < 128) -> lane-folded grouped path.
    hidden_s = 32
    x_s = jax.random.normal(k2, (batch, seq, hidden_s), dtype=jnp.float32)
    a2_s = jnp.ones((hidden_s,), dtype=jnp.float32)
    b2_s = jnp.zeros((hidden_s,), dtype=jnp.float32)

    out_s = jax.block_until_ready(layer_norm(x_s, a2_s, b2_s, eps=eps))
    ref_s = _reference(x_s, a2_s, b2_s, eps)
    assert out_s.shape == x_s.shape and out_s.dtype == x_s.dtype
    err_s = float(jnp.max(jnp.abs(out_s - ref_s)))
    assert err_s < 1e-4, f"max abs err (H=32, folded) {err_s}"

    print("KERNEL_OK")
</pallas_src>

<mosaic_0001>
module attributes {stable_mosaic.version = 11 : i64} {
  func.func @_layernorm_kernel(%arg0: i32, %arg1: memref<8x128xf32, #tpu.memory_space<vmem>>, %arg2: memref<1x128xf32, #tpu.memory_space<vmem>>, %arg3: memref<1x128xf32, #tpu.memory_space<vmem>>, %arg4: memref<8x128xf32, #tpu.memory_space<vmem>>) attributes {dimension_semantics = [#tpu.dimension_semantics<parallel>], iteration_bounds = array<i64: 2>, scalar_prefetch = 0 : i64, scratch_operands = 0 : i64, tpu.core_type = #tpu.core_type<tc>, window_params = [{transform_indices = @transform_0, window_bounds = array<i64: 8, 128>}, {pipeline_mode = #tpu.pipeline_mode<synchronous>, transform_indices = @transform_1, window_bounds = array<i64: 1, 128>}, {pipeline_mode = #tpu.pipeline_mode<synchronous>, transform_indices = @transform_2, window_bounds = array<i64: 1, 128>}, {transform_indices = @transform_3, window_bounds = array<i64: 8, 128>}]} {
    %c0 = arith.constant 0 : index
    %c0_0 = arith.constant 0 : index
    %0 = vector.load %arg1[%c0, %c0_0] : memref<8x128xf32, #tpu.memory_space<vmem>>, vector<8x128xf32>
    %cst = arith.constant dense<0.000000e+00> : vector<8xf32>
    %1 = vector.multi_reduction <add>, %0, %cst [1] : vector<8x128xf32> to vector<8xf32>
    %2 = vector.shape_cast %1 : vector<8xf32> to vector<8x1xf32>
    %cst_1 = arith.constant 1.280000e+02 : f32
    %3 = vector.broadcast %cst_1 : f32 to vector<8x1xf32>
    %4 = arith.divf %2, %3 : vector<8x1xf32>
    %5 = vector.broadcast %4 : vector<8x1xf32> to vector<8x128xf32>
    %6 = arith.subf %0, %5 : vector<8x128xf32>
    %7 = arith.mulf %6, %6 : vector<8x128xf32>
    %cst_2 = arith.constant dense<0.000000e+00> : vector<8xf32>
    %8 = vector.multi_reduction <add>, %7, %cst_2 [1] : vector<8x128xf32> to vector<8xf32>
    %9 = vector.shape_cast %8 : vector<8xf32> to vector<8x1xf32>
    %cst_3 = arith.constant 0.00787401571 : f32
    %10 = vector.broadcast %cst_3 : f32 to vector<8x1xf32>
    %11 = arith.mulf %9, %10 : vector<8x1xf32>
    %12 = math.sqrt %11 : vector<8x1xf32>
    %cst_4 = arith.constant 9.99999997E-7 : f32
    %13 = vector.broadcast %cst_4 : f32 to vector<8x1xf32>
    %14 = arith.addf %12, %13 : vector<8x1xf32>
    %cst_5 = arith.constant 1.000000e+00 : f32
    %15 = vector.broadcast %cst_5 : f32 to vector<8x1xf32>
    %16 = arith.divf %15, %14 : vector<8x1xf32>
    %c0_6 = arith.constant 0 : index
    %c0_7 = arith.constant 0 : index
    %17 = vector.load %arg2[%c0_6, %c0_7] : memref<1x128xf32, #tpu.memory_space<vmem>>, vector<1x128xf32>
    %c0_8 = arith.constant 0 : index
    %c0_9 = arith.constant 0 : index
    %18 = vector.load %arg3[%c0_8, %c0_9] : memref<1x128xf32, #tpu.memory_space<vmem>>, vector<1x128xf32>
    %19 = vector.broadcast %16 : vector<8x1xf32> to vector<8x128xf32>
    %20 = arith.mulf %6, %19 : vector<8x128xf32>
    %21 = vector.broadcast %17 : vector<1x128xf32> to vector<8x128xf32>
    %22 = arith.mulf %20, %21 : vector<8x128xf32>
    %23 = vector.broadcast %18 : vector<1x128xf32> to vector<8x128xf32>
    %24 = arith.addf %22, %23 : vector<8x128xf32>
    %c0_10 = arith.constant 0 : index
    %c0_11 = arith.constant 0 : index
    %25 = vector.load %arg4[%c0_10, %c0_11] : memref<8x128xf32, #tpu.memory_space<vmem>>, vector<8x128xf32>
    tpu.vector_store %arg4[%c0_10, %c0_11], %24 {strides = array<i32>} : memref<8x128xf32, #tpu.memory_space<vmem>>, vector<8x128xf32>,
    return
  }
  func.func @transform_0(%arg0: i32) -> (i32, i32) {
    %c0_i32 = arith.constant 0 : i32
    %c0_i32_0 = arith.constant 0 : i32
    return %arg0, %c0_i32 : i32, i32
  }
  func.func @transform_1(%arg0: i32) -> (i32, i32) {
    %c0_i32 = arith.constant 0 : i32
    %c0_i32_0 = arith.constant 0 : i32
    %c0_i32_1 = arith.constant 0 : i32
    return %c0_i32, %c0_i32_0 : i32, i32
  }
  func.func @transform_2(%arg0: i32) -> (i32, i32) {
    %c0_i32 = arith.constant 0 : i32
    %c0_i32_0 = arith.constant 0 : i32
    %c0_i32_1 = arith.constant 0 : i32
    return %c0_i32, %c0_i32_0 : i32, i32
  }
  func.func @transform_3(%arg0: i32) -> (i32, i32) {
    %c0_i32 = arith.constant 0 : i32
    %c0_i32_0 = arith.constant 0 : i32
    return %arg0, %c0_i32 : i32, i32
  }
}

</mosaic_0001>

<llo_original>
// kernel: tpu_custom_call.1
$region0: #{tpu_custom_call.1}
  #allocation0 [shape = 'u32[]', space=smem, size = 0x4, offset = 0x4, fixed_abs, tag = 'smem constant byte address 0x4 - core index']
  #allocation1 [shape = 'u32[72,128]{1,0:T(1,128)}', space=vmem, size = 0x9000, scoped, tag = 'internal scratch']
  %s0 = inlined_call_operand.hbm [shape: f32[16,128], index: 0, kind: input, shape index: {}]
  %s1 = inlined_call_operand.hbm [shape: f32[1,128], index: 1, kind: input, shape index: {}]
  %s2 = inlined_call_operand.vmem [shape: f32[1,128], index: 2, kind: input, shape index: {}]
  %s3 = inlined_call_operand.hbm [shape: f32[16,128], index: 3, kind: output, shape index: {}]
  %s4 = sld [smem:[#allocation0]]
  $region53: #{tpu_custom_call.1} parent=0
    _
  %s6 = ssub.s32 1, %s4
  %s7 = scalar_select 0, %s6, %s4
  $region1: #{tpu_custom_call.1} parent=0
    #allocation2 [shape = 'u8[8192]{0}', space=vmem, size = 0x2000, scoped, tag = 'input window, operand 0']
    #allocation3 [shape = 's32[2]{0}', space=sflag, size = 0x8, scoped, tag = 'scoped memory for tpu_custom_call.1']
    #allocation4 [shape = 's32[2]{0}', space=sflag, size = 0x8, scoped, tag = 'scoped memory for tpu_custom_call.1']
    #allocation5 [shape = 'u8[512]{0}', space=vmem, size = 0x400, scoped, tag = 'input window, operand 1, single buffered']
    #allocation6 [shape = 's32[1]{0}', space=sflag, size = 0x4, scoped, tag = 'scoped memory for tpu_custom_call.1']
    #allocation7 [shape = 'u8[8192]{0}', space=vmem, size = 0x2000, scoped, tag = 'output window, operand 0']
    %8 = vsyncpa [#allocation3], 0
    %s9 = scalar_lea.sflag [#allocation3], 1
    %10 = vsyncpa %s9, 0
    %11 = vsyncpa [#allocation6], 0
    %12 = vsyncpa [#allocation4], 0
    %s13 = scalar_lea.sflag [#allocation4], 1
    %14 = vsyncpa %s13, 0
    loop: start=0, step=1, limit=4
    $region2: #{tpu_custom_call.1} parent=1 // loop_pre_header
      _
    $region3: #{tpu_custom_call.1} parent=1 // loop_header
      %s16 = sphi 0, %s20
      %p17 = scmp.ge.s32.totalorder %s16, 4
      %s26 = sphi 0, %s28
      %s29 = sphi 0, %s26
      %s30 = sphi 0, %s29
      %s46 = sphi 0, %s30
      %s50 = sphi 0, %s50
      %s52 = sphi 0, %s50
      %s53 = sphi 0, %s52
      %s67 = sphi 0, %s53
      %s71 = sphi 0, %s71
      %s73 = sphi 0, %s71
      %s74 = sphi 0, %s73
      %s88 = sphi 0, %s74
      %s94 = sphi 0, %s96
      %s97 = sphi 0, %s94
      %s98 = sphi 0, %s97
      %s114 = sphi 0, %s98
    $region4: #{tpu_custom_call.1} parent=1 // loop_header_branch
      %19 = sbr.rel (%p17) target = $region8
    $region5: #{tpu_custom_call.1} parent=1 // loop_body
      %s21 = ssub.s32 %s16, 1
      %s22 = ssub.s32 %s16, 2
      %s23 = sadd.s32 %s16, 1
      %s24 = ssub.s32 %s16, %s23
      %p25 = scmp.eq.s32.totalorder %s24, 0
      %s27 = sadd.s32 %s26, 1
      %s28 = scalar_select %p25, %s26, %s27
      %p31 = pneg %p25
      %p32 = scmp.eq.s32.totalorder %s16, 1
      %p33 = por %p31, %p32
      %p34 = scmp.ne.s32.totalorder %s26, %s29
      %p35 = scmp.eq.s32.totalorder %s16, 0
      %p36 = por %p34, %p35
      %p37 = scmp.ne.s32.totalorder %s26, %s29
      %p38 = scmp.eq.s32.totalorder %s21, 1
      %p39 = por %p37, %p38
      %p40 = scmp.ne.s32.totalorder %s29, %s30
      %p41 = scmp.eq.s32.totalorder %s21, 0
      %p42 = por %p40, %p41
      %p43 = scmp.ne.s32.totalorder %s29, %s30
      %p44 = scmp.eq.s32.totalorder %s22, 1
      %p45 = por %p43, %p44
      %p47 = scmp.ne.s32.totalorder %s30, %s46
      %p48 = scmp.eq.s32.totalorder %s22, 0
      %p49 = por %p47, %p48
      %s51 = sadd.s32 %s50, 1
      %p54 = scmp.eq.s32.totalorder %s16, 1
      %p55 = scmp.ne.s32.totalorder %s50, %s52
      %p56 = scmp.eq.s32.totalorder %s16, 0
      %p57 = por %p55, %p56
      %p58 = scmp.ne.s32.totalorder %s50, %s52
      %p59 = scmp.eq.s32.totalorder %s21, 1
      %p60 = por %p58, %p59
      %p61 = scmp.ne.s32.totalorder %s52, %s53
      %p62 = scmp.eq.s32.totalorder %s21, 0
      %p63 = por %p61, %p62
      %p64 = scmp.ne.s32.totalorder %s52, %s53
      %p65 = scmp.eq.s32.totalorder %s22, 1
      %p66 = por %p64, %p65
      %p68 = scmp.ne.s32.totalorder %s53, %s67
      %p69 = scmp.eq.s32.totalorder %s22, 0
      %p70 = por %p68, %p69
      %s72 = sadd.s32 %s71, 1
      %p75 = scmp.eq.s32.totalorder %s16, 1
      %p76 = scmp.ne.s32.totalorder %s71, %s73
      %p77 = scmp.eq.s32.totalorder %s16, 0
      %p78 = por %p76, %p77
      %p79 = scmp.ne.s32.totalorder %s71, %s73
      %p80 = scmp.eq.s32.totalorder %s21, 1
      %p81 = por %p79, %p80
      %p82 = scmp.ne.s32.totalorder %s73, %s74
      %p83 = scmp.eq.s32.totalorder %s21, 0
      %p84 = por %p82, %p83
      %p85 = scmp.ne.s32.totalorder %s73, %s74
      %p86 = scmp.eq.s32.totalorder %s22, 1
      %p87 = por %p85, %p86
      %p89 = scmp.ne.s32.totalorder %s74, %s88
      %p90 = scmp.eq.s32.totalorder %s22, 0
      %p91 = por %p89, %p90
      %s92 = ssub.s32 %s16, %s23
      %p93 = scmp.eq.s32.totalorder %s92, 0
      %s95 = sadd.s32 %s94, 1
      %s96 = scalar_select %p93, %s94, %s95
      %p99 = pneg %p93
      %p100 = scmp.eq.s32.totalorder %s16, 1
      %p101 = por %p99, %p100
      %p102 = scmp.ne.s32.totalorder %s94, %s97
      %p103 = scmp.eq.s32.totalorder %s16, 0
      %p104 = por %p102, %p103
      %p105 = scmp.ne.s32.totalorder %s94, %s97
      %p106 = scmp.eq.s32.totalorder %s21, 1
      %p107 = por %p105, %p106
      %p108 = scmp.ne.s32.totalorder %s97, %s98
      %p109 = scmp.eq.s32.totalorder %s21, 0
      %p110 = por %p108, %p109
      %p111 = scmp.ne.s32.totalorder %s97, %s98
      %p112 = scmp.eq.s32.totalorder %s22, 1
      %p113 = por %p111, %p112
      %p115 = scmp.ne.s32.totalorder %s98, %s114
      %p116 = scmp.eq.s32.totalorder %s22, 0
      %p117 = por %p115, %p116
      %p118 = scmp.le.s32.totalorder 1, %s16
      %p119 = scmp.lt.s32.totalorder %s16, 3
      %p120 = pnand %p118, %p119
      %p121 = pneg %p120
      // Predicated region
      $region9: #{tpu_custom_call.1} parent=5 // pred_check
        _
      $region10: #{tpu_custom_call.1} parent=5 // pred_check_branch
        %123 = sbr.rel (%p120) target = $region12
      $region11: #{tpu_custom_call.1} parent=5 // pred_region
        %s124 = ssub.s32 %s16, 1
        // Predicated region
        $region13: #{tpu_custom_call.1} parent=11 // pred_check
          %p125 = pneg %p63
        $region14: #{tpu_custom_call.1} parent=11 // pred_check_branch
          %127 = sbr.rel (%p125) target = $region16
        $region15: #{tpu_custom_call.1} parent=11 // pred_region
          %129 = vsyncadd [#allocation6], 0
          %s131 = sshll.u32 %s1, 4
          %s132 = int_to_ptr.hbm [resolvable:$true] %s131
          %s133 = sshll.u32 [#allocation5], 4
          %s134 = int_to_ptr.vmem [resolvable:$true] %s133
          %136 = dma.hbm_to_vmem [thread:$0]  %s132, 16, %s134, [#allocation6]
        $region16: #{tpu_custom_call.1} parent=11 // pred_fallthru
          _
        // Predicated region
        $region17: #{tpu_custom_call.1} parent=11 // pred_check
          %p137 = pneg %p84
        $region18: #{tpu_custom_call.1} parent=11 // pred_check_branch
          %139 = sbr.rel (%p137) target = $region20
        $region19: #{tpu_custom_call.1} parent=11 // pred_region
          _
        $region20: #{tpu_custom_call.1} parent=11 // pred_fallthru
          _
      $region12: #{tpu_custom_call.1} parent=5 // pred_fallthru
        _
      %p140 = scmp.lt.s32.totalorder %s16, 2
      // Predicated region
      $region21: #{tpu_custom_call.1} parent=5 // pred_check
        %p141 = pneg %p140
      $region22: #{tpu_custom_call.1} parent=5 // pred_check_branch
        %143 = sbr.rel (%p141) target = $region24
      $region23: #{tpu_custom_call.1} parent=5 // pred_region
        // Predicated region
        $region25: #{tpu_custom_call.1} parent=23 // pred_check
          %p144 = pneg %p36
        $region26: #{tpu_custom_call.1} parent=23 // pred_check_branch
          %146 = sbr.rel (%p144) target = $region28
        $region27: #{tpu_custom_call.1} parent=23 // pred_region
          %s147 = sand.u32 %s26, 1
          %s148 = scalar_lea.sflag [#allocation3], %s147
          %s149 = sand.u32 %s26, 1
          %s150 = smul.addr %s149, 8
          %s151 = scalar_lea.vmem [#allocation2], %s150
          %153 = vsyncadd %s148, 0
          %s154 = smul.addr %s16, 8
          %s155 = scalar_lea.hbm %s0, %s154
          %s157 = sshll.u32 %s155, 4
          %s158 = int_to_ptr.hbm [resolvable:$true] %s157
          %s159 = sshll.u32 %s151, 4
          %s160 = int_to_ptr.vmem [resolvable:$true] %s159
          %162 = dma.hbm_to_vmem [thread:$0]  %s158, 128, %s160, %s148
        $region28: #{tpu_custom_call.1} parent=23 // pred_fallthru
          _
      $region24: #{tpu_custom_call.1} parent=5 // pred_fallthru
        _
      %p163 = scmp.le.s32.totalorder 1, %s16
      %p164 = scmp.lt.s32.totalorder %s16, 3
      %p165 = pnand %p163, %p164
      %p166 = pneg %p165
      // Predicated region
      $region29: #{tpu_custom_call.1} parent=5 // pred_check
        _
      $region30: #{tpu_custom_call.1} parent=5 // pred_check_branch
        %168 = sbr.rel (%p165) target = $region32
      $region31: #{tpu_custom_call.1} parent=5 // pred_region
        %s169 = ssub.s32 %s16, 1
        %s170 = sand.u32 %s29, 1
        %s171 = scalar_lea.sflag [#allocation3], %s170
        %s172 = sand.u32 %s29, 1
        %s173 = smul.addr %s172, 8
        %s174 = scalar_lea.vmem [#allocation2], %s173
        // Predicated region
        $region33: #{tpu_custom_call.1} parent=31 // pred_check
          %p175 = pneg %p42
        $region34: #{tpu_custom_call.1} parent=31 // pred_check_branch
          %177 = sbr.rel (%p175) target = $region36
        $region35: #{tpu_custom_call.1} parent=31 // pred_region
          %179 = dma.done %s171, 128
        $region36: #{tpu_custom_call.1} parent=31 // pred_fallthru
          _
        // Predicated region
        $region37: #{tpu_custom_call.1} parent=31 // pred_check
          %p180 = pneg %p63
        $region38: #{tpu_custom_call.1} parent=31 // pred_check_branch
          %182 = sbr.rel (%p180) target = $region40
        $region39: #{tpu_custom_call.1} parent=31 // pred_region
          %184 = dma.done [#allocation6], 16
        $region40: #{tpu_custom_call.1} parent=31 // pred_fallthru
          _
        %s185 = sand.u32 %s29, 1
        %s186 = scalar_lea.sflag [#allocation3], %s185
        %s187 = sand.u32 %s29, 1
        %s188 = smul.addr %s187, 8
        %s189 = scalar_lea.vmem [#allocation2], %s188
        %p190 = pneg %p42
        %p191 = pneg %p39
        %p192 = pneg %p63
        %p193 = pneg %p60
        %p194 = pneg %p84
        %p195 = pneg %p81
        %p196 = pneg %p110
        %p197 = pneg %p107
        %s198 = sand.u32 %s97, 1
        %s199 = scalar_lea.sflag [#allocation4], %s198
        %s200 = sand.u32 %s97, 1
        %s201 = smul.addr %s200, 8
        %s202 = scalar_lea.vmem [#allocation7], %s201
        %v203 = vld [vmem:[%s174] sm:$0xff]
        %204 = vadd.xlane.f32.xlu0 %v203
        %v205 = vpop.xlane.xlu0 %204
        %v206 = vrcp.pop 128.0
        %v207 = vmul.f32 128.0, %v206
        %v208 = vsub.f32 1.0, %v207
        %v209 = vmul.f32 %v206, %v208
        %v210 = vadd.f32 %v206, %v209
        %vm211 = vweird.f32 %v206
        %v212 = vsel %vm211, %v206, %v210
        %v213 = vmul.f32 %v205, %v212
        %v214 = vsub.f32 %v203, %v213
        %v215 = vmul.f32 %v214, %v214
        %216 = vadd.xlane.f32.xlu0 %v215
        %v217 = vpop.xlane.xlu0 %216
        %v218 = vmul.f32 %v217, 0.007874016
        %v219 = vrsqrt.pop %v218
        %v220 = vmul.f32 %v219, %v218
        %v221 = vmul.f32 %v220, %v219
        %v222 = vmul.f32 0.5, %v221
        %v223 = vsub.f32 1.5, %v222
        %v224 = vmul.f32 %v219, %v223
        %v225 = vmul.f32 %v218, %v224
        %vm226 = vcmp.eq.f32.partialorder %v218, inf
        %v227 = vsel %vm226, %v218, %v225
        %vm228 = vcmp.eq.f32.partialorder %v218, 0.0
        %v229 = vand.u32 %v218, 2147483648
        %v230 = vsel %vm228, %v229, %v227
        %v231 = vadd.f32 %v230, 1e-06
        %v232 = vrcp.pop %v231
        %v233 = vmul.f32 %v231, %v232
        %v234 = vsub.f32 1.0, %v233
        %v235 = vmul.f32 %v232, %v234
        %v236 = vadd.f32 %v232, %v235
        %vm237 = vweird.f32 %v231
        %vm238 = vweird.f32 %v232
        %vm239 = vmor %vm237, %vm238
        %v240 = vsel %vm239, %v232, %v236
        %v241 = vand.u32 2147483647, %v231
        %vm242 = vcmp.eq.f32.partialorder %v241, 8.507059e+37
        %v243 = vand.u32 %v231, 2147483648
        %v244 = vor.u32 1.1754944e-38, %v243
        %v245 = vsel %vm242, %v244, %v240
        %v246 = vmul.f32 1.0, %v245
        %v247 = vld [vmem:[#allocation5] sm:$0x1]
        %v248 = vld [vmem:[%s2] sm:$0x1]
        %v249 = vmul.f32 %v214, %v246
        %v251 = vperm.slane %v247, 0
        %v253 = vmul.f32 %v249, %v251
        %v255 = vperm.slane %v248, 0
        %v257 = vadd.f32 %v253, %v255
        %258 = vst [vmem:[%s202] sm:$0xff] %v257
        %s259 = sand.u32 %s97, 1
        %s260 = scalar_lea.sflag [#allocation4], %s259
        %s261 = sand.u32 %s97, 1
        %s262 = smul.addr %s261, 8
        %s263 = scalar_lea.vmem [#allocation7], %s262
        // Predicated region
        $region41: #{tpu_custom_call.1} parent=31 // pred_check
          %p264 = pneg %p107
        $region42: #{tpu_custom_call.1} parent=31 // pred_check_branch
          %266 = sbr.rel (%p264) target = $region44
        $region43: #{tpu_custom_call.1} parent=31 // pred_region
          %268 = vsyncadd %s260, 0
          %s269 = smul.addr %s21, 8
          %s270 = scalar_lea.hbm %s3, %s269
          %s272 = sshll.u32 %s263, 4
          %s273 = int_to_ptr.vmem [resolvable:$true] %s272
          %s274 = sshll.u32 %s270, 4
          %s275 = int_to_ptr.hbm [resolvable:$true] %s274
          %277 = dma.vmem_to_hbm [thread:$0]  %s273, 128, %s275, %s260
        $region44: #{tpu_custom_call.1} parent=31 // pred_fallthru
          _
      $region32: #{tpu_custom_call.1} parent=5 // pred_fallthru
        _
      %p278 = scmp.le.s32.totalorder 2, %s16
      // Predicated region
      $region45: #{tpu_custom_call.1} parent=5 // pred_check
        %p279 = pneg %p278
      $region46: #{tpu_custom_call.1} parent=5 // pred_check_branch
        %281 = sbr.rel (%p279) target = $region48
      $region47: #{tpu_custom_call.1} parent=5 // pred_region
        %s282 = ssub.s32 %s16, 2
        // Predicated region
        $region49: #{tpu_custom_call.1} parent=47 // pred_check
          %p283 = pneg %p113
        $region50: #{tpu_custom_call.1} parent=47 // pred_check_branch
          %285 = sbr.rel (%p283) target = $region52
        $region51: #{tpu_custom_call.1} parent=47 // pred_region
          %s286 = sand.u32 %s98, 1
          %s287 = scalar_lea.sflag [#allocation4], %s286
          %s288 = sand.u32 %s98, 1
          %s289 = smul.addr %s288, 8
          %s290 = scalar_lea.vmem [#allocation7], %s289
          %292 = dma.done %s287, 128
        $region52: #{tpu_custom_call.1} parent=47 // pred_fallthru
          _
      $region48: #{tpu_custom_call.1} parent=5 // pred_fallthru
        _
    $region6: #{tpu_custom_call.1} parent=1 // loop_footer
      %s20 = sadd.s32 1, %s16
    $region7: #{tpu_custom_call.1} parent=1 // loop_footer_branch
      %15 = sbr.rel target = $region3
    $region8: #{tpu_custom_call.1} parent=1 // loop_exit
      _
    %293 = vsyncpa [#allocation3], 1
    %s294 = scalar_lea.sflag [#allocation3], 1
    %295 = vsyncpa %s294, 1
    %296 = vsyncpa [#allocation6], 1
    %297 = vsyncpa [#allocation4], 1
    %s298 = scalar_lea.sflag [#allocation4], 1
    %299 = vsyncpa %s298, 1

</llo_original>
